<compile_context>
chip_gen: v7x
topology: tpu7x:2x2x1
jax: 0.10.0
libtpu: 0.0.40
codegen_flags: <defaults>
</compile_context>

<pallas_src>
import functools

import jax
import jax.numpy as jnp
from jax.experimental import pallas as pl
from jax.experimental.pallas import tpu as pltpu

LANE = 128  # lane-dense padded width for hidden layers / packed weight slabs


def _round_up(n, m):
    return ((n + m - 1) // m) * m


def dqn_kernel(x_ref, w1_ref, w_ref, b_ref, o_ref):
    """One batch tile of the 4-layer MLP.

    x_ref : (TB, sd_pad)  f32   batch tile of inputs
    w1_ref: (sd_pad, 128) bf16  layer-1 weights (zero-padded, VMEM-resident)
    w_ref : (384, 128)    bf16  layers 2-4 weights, three 128-row aligned segments
    b_ref : (4, 128)      f32   packed zero-padded biases
    o_ref : (TB, action_dim) f32 compact output block
    """
    f32, bf16 = jnp.float32, jnp.bfloat16

    x = x_ref[...].astype(bf16)
    b1 = b_ref[0:1, :]
    b2 = b_ref[1:2, :]
    b3 = b_ref[2:3, :]
    b4 = b_ref[3:4, :]

    # bf16 MXU operands, f32 accumulation, f32 bias + ReLU.
    h = jnp.dot(x, w1_ref[...], preferred_element_type=f32) + b1
    h = jnp.maximum(h, 0.0).astype(bf16)
    h = jnp.dot(h, w_ref[0:128, :], preferred_element_type=f32) + b2
    h = jnp.maximum(h, 0.0).astype(bf16)
    h = jnp.dot(h, w_ref[128:256, :], preferred_element_type=f32) + b3
    h = jnp.maximum(h, 0.0).astype(bf16)
    q = jnp.dot(h, w_ref[256:384, :], preferred_element_type=f32) + b4

    # Only the first action_dim lanes are useful; store just those (the padded
    # lanes of q are exactly zero thanks to the zero-padded weights/biases).
    o_ref[...] = q[:, : o_ref.shape[-1]].astype(o_ref.dtype)


def pack_params(params, state_dim, action_dim):
    """Pack weights into zero-padded bf16 slabs and biases into one f32 slab."""
    assert action_dim <= LANE, "action_dim > 128 not supported by this packing"
    bf16 = jnp.bfloat16
    sd_pad = _round_up(state_dim, 8)

    w1p = jnp.zeros((sd_pad, LANE), bf16).at[:state_dim, :32].set(
        params["w1"].astype(bf16))
    w2 = jnp.zeros((LANE, LANE), bf16).at[:32, :32].set(params["w2"].astype(bf16))
    w3 = jnp.zeros((LANE, LANE), bf16).at[:32, :16].set(params["w3"].astype(bf16))
    w4 = jnp.zeros((LANE, LANE), bf16).at[:16, :action_dim].set(
        params["w4"].astype(bf16))
    w234 = jnp.concatenate([w2, w3, w4], axis=0)  # (384, 128) bf16, 128-row aligned

    b_slab = (jnp.zeros((4, LANE), jnp.float32)
              .at[0, :32].set(params["b1"][0])
              .at[1, :32].set(params["b2"][0])
              .at[2, :16].set(params["b3"][0])
              .at[3, :action_dim].set(params["b4"][0]))
    return w1p, w234, b_slab, sd_pad


def dqn_target_forward(x, params, *, tb_max=4096):
    """x: (B, state_dim) f32; params: dict of weights (in,out) and biases (1,out)."""
    B, state_dim = x.shape
    action_dim = params["w4"].shape[1]
    w1p, w234, b_slab, sd_pad = pack_params(params, state_dim, action_dim)

    # Feature pad to a sublane multiple (no-op when state_dim % 8 == 0).
    if sd_pad != state_dim:
        x = jnp.pad(x, ((0, 0), (0, sd_pad - state_dim)))

    # >= 4 tiles when the batch allows it (>= 2 pipelined steps per v7x core),
    # capped at tb_max; always a multiple of 8 sublanes.
    TB = max(8, min(tb_max, _round_up(pl.cdiv(B, 4), 8)))
    grid = (pl.cdiv(B, TB),)  # ragged last block is clipped by Pallas

    flops = 2 * B * (sd_pad * LANE + 3 * LANE * LANE)
    bytes_accessed = (B * sd_pad * 4 + B * action_dim * 4
                      + w1p.size * 2 + w234.size * 2 + b_slab.size * 4)

    out = pl.pallas_call(
        dqn_kernel,
        out_shape=jax.ShapeDtypeStruct((B, action_dim), jnp.float32),
        grid=grid,
        in_specs=[
            pl.BlockSpec((TB, sd_pad), lambda i: (i, 0)),   # batch-tiled activations
            pl.BlockSpec(w1p.shape, lambda i: (0, 0)),      # resident layer-1 weights
            pl.BlockSpec(w234.shape, lambda i: (0, 0)),     # resident layers 2-4 slab
            pl.BlockSpec(b_slab.shape, lambda i: (0, 0)),   # resident bias slab
        ],
        out_specs=pl.BlockSpec((TB, action_dim), lambda i: (i, 0)),  # compact output
        compiler_params=pltpu.CompilerParams(
            dimension_semantics=("parallel",),              # shard batch across TCs
            vmem_limit_bytes=32 * 1024 * 1024),
        cost_estimate=pl.CostEstimate(
            flops=flops, transcendentals=0, bytes_accessed=bytes_accessed),
    )(x, w1p, w234, b_slab)
    return out


def init_params(key, state_dim, action_dim):
    """Deterministic init mimicking PyTorch nn.Linear default (uniform +-1/sqrt(fan_in))."""
    dims = [(state_dim, 32), (32, 32), (32, 16), (16, action_dim)]
    params = {}
    for i, (fan_in, fan_out) in enumerate(dims, start=1):
        key, kw, kb = jax.random.split(key, 3)
        bound = 1.0 / jnp.sqrt(float(fan_in))
        params[f"w{i}"] = jax.random.uniform(
            kw, (fan_in, fan_out), jnp.float32, minval=-bound, maxval=bound)
        params[f"b{i}"] = jax.random.uniform(
            kb, (1, fan_out), jnp.float32, minval=-bound, maxval=bound)
    return params


def reference_forward(x, params, *, match_kernel=False):
    """Pure-JAX reference. match_kernel=True mirrors the kernel's bf16 matmul operands."""
    c = (lambda a: a.astype(jnp.bfloat16)) if match_kernel else (lambda a: a)
    f32 = jnp.float32
    h = jnp.maximum(jnp.dot(c(x), c(params["w1"]), preferred_element_type=f32)
                    + params["b1"], 0.0)
    h = jnp.maximum(jnp.dot(c(h), c(params["w2"]), preferred_element_type=f32)
                    + params["b2"], 0.0)
    h = jnp.maximum(jnp.dot(c(h), c(params["w3"]), preferred_element_type=f32)
                    + params["b3"], 0.0)
    return jnp.dot(c(h), c(params["w4"]), preferred_element_type=f32) + params["b4"]


if __name__ == "__main__":
    key = jax.random.PRNGKey(0)
    state_dim, action_dim = 8, 4

    kx, kp, kx2 = jax.random.split(key, 3)
    params = init_params(kp, state_dim, action_dim)

    # Small shape (as in the original spec / toy test).
    x_small = jax.random.normal(kx, (2, state_dim), jnp.float32)
    out_small = jax.block_until_ready(dqn_target_forward(x_small, params))
    assert out_small.shape == (2, action_dim)
    assert jnp.allclose(out_small,
                        reference_forward(x_small, params, match_kernel=True),
                        atol=1e-3, rtol=1e-3)
    assert jnp.allclose(out_small, reference_forward(x_small, params),
                        atol=5e-2, rtol=5e-2)

    # Larger ragged batch: 4100 rows -> 4 tiles with a clipped last block.
    x_big = jax.random.normal(kx2, (4100, state_dim), jnp.float32)
    out_big = jax.block_until_ready(dqn_target_forward(x_big, params))
    assert out_big.shape == (4100, action_dim)
    assert jnp.allclose(out_big,
                        reference_forward(x_big, params, match_kernel=True),
                        atol=1e-3, rtol=1e-3)
    assert jnp.allclose(out_big, reference_forward(x_big, params),
                        atol=5e-2, rtol=5e-2)

    print("KERNEL_OK")
</pallas_src>

<mosaic_0001>
module attributes {stable_mosaic.version = 11 : i64} {
  func.func @dqn_kernel(%arg0: i32, %arg1: memref<8x8xf32, #tpu.memory_space<vmem>>, %arg2: memref<8x128xbf16, #tpu.memory_space<vmem>>, %arg3: memref<384x128xbf16, #tpu.memory_space<vmem>>, %arg4: memref<4x128xf32, #tpu.memory_space<vmem>>, %arg5: memref<8x4xf32, #tpu.memory_space<vmem>>) attributes {dimension_semantics = [#tpu.dimension_semantics<parallel>], iteration_bounds = array<i64: 1>, scalar_prefetch = 0 : i64, scratch_operands = 0 : i64, tpu.core_type = #tpu.core_type<tc>, window_params = [{transform_indices = @transform_0, window_bounds = array<i64: 8, 8>}, {pipeline_mode = #tpu.pipeline_mode<synchronous>, transform_indices = @transform_1, window_bounds = array<i64: 8, 128>}, {pipeline_mode = #tpu.pipeline_mode<synchronous>, transform_indices = @transform_2, window_bounds = array<i64: 384, 128>}, {pipeline_mode = #tpu.pipeline_mode<synchronous>, transform_indices = @transform_3, window_bounds = array<i64: 4, 128>}, {transform_indices = @transform_4, window_bounds = array<i64: 8, 4>}]} {
    %c0 = arith.constant 0 : index
    %c0_0 = arith.constant 0 : index
    %0 = vector.load %arg1[%c0, %c0_0] : memref<8x8xf32, #tpu.memory_space<vmem>>, vector<8x8xf32>
    %1 = arith.truncf %0 : vector<8x8xf32> to vector<8x8xbf16>
    %c0_1 = arith.constant 0 : index
    %c0_2 = arith.constant 0 : index
    %2 = vector.load %arg4[%c0_1, %c0_2] : memref<4x128xf32, #tpu.memory_space<vmem>>, vector<1x128xf32>
    %c1 = arith.constant 1 : index
    %c0_3 = arith.constant 0 : index
    %3 = vector.load %arg4[%c1, %c0_3] : memref<4x128xf32, #tpu.memory_space<vmem>>, vector<1x128xf32>
    %c2 = arith.constant 2 : index
    %c0_4 = arith.constant 0 : index
    %4 = vector.load %arg4[%c2, %c0_4] : memref<4x128xf32, #tpu.memory_space<vmem>>, vector<1x128xf32>
    %c3 = arith.constant 3 : index
    %c0_5 = arith.constant 0 : index
    %5 = vector.load %arg4[%c3, %c0_5] : memref<4x128xf32, #tpu.memory_space<vmem>>, vector<1x128xf32>
    %c0_6 = arith.constant 0 : index
    %c0_7 = arith.constant 0 : index
    %6 = vector.load %arg2[%c0_6, %c0_7] : memref<8x128xbf16, #tpu.memory_space<vmem>>, vector<8x128xbf16>
    %cst = arith.constant dense<0.000000e+00> : vector<8x128xf32>
    %7 = tpu.matmul %1, %6, %cst {dimension_numbers = #tpu.dot_dimension_numbers<[1], [0], [0], [1], [0, 0, 1, 1], [], []>} : vector<8x8xbf16>, vector<8x128xbf16>, vector<8x128xf32> -> vector<8x128xf32>
    %8 = vector.broadcast %2 : vector<1x128xf32> to vector<8x128xf32>
    %9 = arith.addf %7, %8 : vector<8x128xf32>
    %cst_8 = arith.constant 0.000000e+00 : f32
    %10 = vector.broadcast %cst_8 : f32 to vector<8x128xf32>
    %11 = arith.maximumf %9, %10 : vector<8x128xf32>
    %12 = arith.truncf %11 : vector<8x128xf32> to vector<8x128xbf16>
    %c0_9 = arith.constant 0 : index
    %c0_10 = arith.constant 0 : index
    %13 = vector.load %arg3[%c0_9, %c0_10] : memref<384x128xbf16, #tpu.memory_space<vmem>>, vector<128x128xbf16>
    %cst_11 = arith.constant dense<0.000000e+00> : vector<8x128xf32>
    %14 = tpu.matmul %12, %13, %cst_11 {dimension_numbers = #tpu.dot_dimension_numbers<[1], [0], [0], [1], [0, 0, 1, 1], [], []>} : vector<8x128xbf16>, vector<128x128xbf16>, vector<8x128xf32> -> vector<8x128xf32>
    %15 = vector.broadcast %3 : vector<1x128xf32> to vector<8x128xf32>
    %16 = arith.addf %14, %15 : vector<8x128xf32>
    %cst_12 = arith.constant 0.000000e+00 : f32
    %17 = vector.broadcast %cst_12 : f32 to vector<8x128xf32>
    %18 = arith.maximumf %16, %17 : vector<8x128xf32>
    %19 = arith.truncf %18 : vector<8x128xf32> to vector<8x128xbf16>
    %c128 = arith.constant 128 : index
    %c0_13 = arith.constant 0 : index
    %20 = vector.load %arg3[%c128, %c0_13] : memref<384x128xbf16, #tpu.memory_space<vmem>>, vector<128x128xbf16>
    %cst_14 = arith.constant dense<0.000000e+00> : vector<8x128xf32>
    %21 = tpu.matmul %19, %20, %cst_14 {dimension_numbers = #tpu.dot_dimension_numbers<[1], [0], [0], [1], [0, 0, 1, 1], [], []>} : vector<8x128xbf16>, vector<128x128xbf16>, vector<8x128xf32> -> vector<8x128xf32>
    %22 = vector.broadcast %4 : vector<1x128xf32> to vector<8x128xf32>
    %23 = arith.addf %21, %22 : vector<8x128xf32>
    %cst_15 = arith.constant 0.000000e+00 : f32
    %24 = vector.broadcast %cst_15 : f32 to vector<8x128xf32>
    %25 = arith.maximumf %23, %24 : vector<8x128xf32>
    %26 = arith.truncf %25 : vector<8x128xf32> to vector<8x128xbf16>
    %c256 = arith.constant 256 : index
    %c0_16 = arith.constant 0 : index
    %27 = vector.load %arg3[%c256, %c0_16] : memref<384x128xbf16, #tpu.memory_space<vmem>>, vector<128x128xbf16>
    %cst_17 = arith.constant dense<0.000000e+00> : vector<8x128xf32>
    %28 = tpu.matmul %26, %27, %cst_17 {dimension_numbers = #tpu.dot_dimension_numbers<[1], [0], [0], [1], [0, 0, 1, 1], [], []>} : vector<8x128xbf16>, vector<128x128xbf16>, vector<8x128xf32> -> vector<8x128xf32>
    %29 = vector.broadcast %5 : vector<1x128xf32> to vector<8x128xf32>
    %30 = arith.addf %28, %29 : vector<8x128xf32>
    %31 = vector.extract_strided_slice %30 {offsets = [0, 0], sizes = [8, 4], strides = [1, 1]} : vector<8x128xf32> to vector<8x4xf32>
    %c0_18 = arith.constant 0 : index
    %c0_19 = arith.constant 0 : index
    %32 = vector.load %arg5[%c0_18, %c0_19] : memref<8x4xf32, #tpu.memory_space<vmem>>, vector<8x4xf32>
    tpu.vector_store %arg5[%c0_18, %c0_19], %31 {strides = array<i32>} : memref<8x4xf32, #tpu.memory_space<vmem>>, vector<8x4xf32>,
    return
  }
  func.func @transform_0(%arg0: i32) -> (i32, i32) {
    %c0_i32 = arith.constant 0 : i32
    %c0_i32_0 = arith.constant 0 : i32
    return %arg0, %c0_i32 : i32, i32
  }
  func.func @transform_1(%arg0: i32) -> (i32, i32) {
    %c0_i32 = arith.constant 0 : i32
    %c0_i32_0 = arith.constant 0 : i32
    %c0_i32_1 = arith.constant 0 : i32
    return %c0_i32, %c0_i32_0 : i32, i32
  }
  func.func @transform_2(%arg0: i32) -> (i32, i32) {
    %c0_i32 = arith.constant 0 : i32
    %c0_i32_0 = arith.constant 0 : i32
    %c0_i32_1 = arith.constant 0 : i32
    return %c0_i32, %c0_i32_0 : i32, i32
  }
  func.func @transform_3(%arg0: i32) -> (i32, i32) {
    %c0_i32 = arith.constant 0 : i32
    %c0_i32_0 = arith.constant 0 : i32
    %c0_i32_1 = arith.constant 0 : i32
    return %c0_i32, %c0_i32_0 : i32, i32
  }
  func.func @transform_4(%arg0: i32) -> (i32, i32) {
    %c0_i32 = arith.constant 0 : i32
    %c0_i32_0 = arith.constant 0 : i32
    return %arg0, %c0_i32 : i32, i32
  }
}

</mosaic_0001>

<llo_original>
// kernel: tpu_custom_call.1
$region0: #{tpu_custom_call.1}
  #allocation0 [shape = 'u32[]', space=smem, size = 0x4, offset = 0x4, fixed_abs, tag = 'smem constant byte address 0x4 - core index']
  #allocation1 [shape = 'u32[144,128]{1,0:T(1,128)}', space=vmem, size = 0x12000, scoped, tag = 'internal scratch']
  %s0 = inlined_call_operand.hbm [shape: f32[2,8], index: 0, kind: input, shape index: {}]
  %s1 = inlined_call_operand.hbm [shape: bf16[8,128], index: 1, kind: input, shape index: {}]
  %s2 = inlined_call_operand.hbm [shape: bf16[384,128], index: 2, kind: input, shape index: {}]
  %s3 = inlined_call_operand.vmem [shape: f32[4,128], index: 3, kind: input, shape index: {}]
  %s4 = inlined_call_operand.hbm [shape: f32[2,4], index: 4, kind: output, shape index: {}]
  %s5 = sld [smem:[#allocation0]]
  $region38: #{tpu_custom_call.1} parent=0
    _
  %s7 = ssub.s32 1, %s5
  %s8 = scalar_select 0, %s7, %s5
  $region1: #{tpu_custom_call.1} parent=0
    #allocation2 [shape = 'u8[4096]{0}', space=vmem, size = 0x1000, scoped, tag = 'input window, operand 0, single buffered']
    #allocation3 [shape = 's32[1]{0}', space=sflag, size = 0x4, scoped, tag = 'scoped memory for tpu_custom_call.1']
    #allocation4 [shape = 's32[1]{0}', space=sflag, size = 0x4, scoped, tag = 'scoped memory for tpu_custom_call.1']
    #allocation5 [shape = 'u8[2048]{0}', space=vmem, size = 0x800, scoped, tag = 'input window, operand 1, single buffered']
    #allocation6 [shape = 's32[1]{0}', space=sflag, size = 0x4, scoped, tag = 'scoped memory for tpu_custom_call.1']
    #allocation7 [shape = 'u8[98304]{0}', space=vmem, size = 0x18000, scoped, tag = 'input window, operand 2, single buffered']
    #allocation8 [shape = 'u8[4096]{0}', space=vmem, size = 0x1000, scoped, tag = 'output window, operand 0, single buffered']
    %9 = vsyncpa [#allocation3], 0
    %10 = vsyncpa [#allocation6], 0
    %11 = vsyncpa [#allocation4], 0
    // Predicated region
    $region2: #{tpu_custom_call.1} parent=1 // pred_check
      _
    $region3: #{tpu_custom_call.1} parent=1 // pred_check_branch
      %13 = sbr.rel (0) target = $region5
    $region4: #{tpu_custom_call.1} parent=1 // pred_region
      %s15 = ssub.s32 128, 32
      %16 = vsyncadd [#allocation3], %s15
      %s17 = sshll.u32 [#allocation2], 4
      %s18 = int_to_ptr.vmem [resolvable:$true] %s17
      %23 = dma.hbm_to_vmem [thread:$0]  %s0, 32, %s18, [#allocation3], 32, 32, 2
    $region5: #{tpu_custom_call.1} parent=1 // pred_fallthru
      _
    // Predicated region
    $region6: #{tpu_custom_call.1} parent=1 // pred_check
      _
    $region7: #{tpu_custom_call.1} parent=1 // pred_check_branch
      %25 = sbr.rel (0) target = $region9
    $region8: #{tpu_custom_call.1} parent=1 // pred_region
      %s27 = ssub.s32 64, 64
      %28 = vsyncadd [#allocation6], %s27
      %s30 = sshll.u32 [#allocation5], 4
      %s31 = int_to_ptr.vmem [resolvable:$true] %s30
      %33 = dma.hbm_to_vmem [thread:$0]  %s1, 64, %s31, [#allocation6]
    $region9: #{tpu_custom_call.1} parent=1 // pred_fallthru
      _
    // Predicated region
    $region10: #{tpu_custom_call.1} parent=1 // pred_check
      _
    $region11: #{tpu_custom_call.1} parent=1 // pred_check_branch
      %35 = sbr.rel (0) target = $region13
    $region12: #{tpu_custom_call.1} parent=1 // pred_region
      %s37 = ssub.s32 3072, 3072
      %38 = vsyncadd [#allocation6], %s37
      %s39 = sshll.u32 [#allocation7], 4
      %s40 = int_to_ptr.vmem [resolvable:$true] %s39
      %45 = dma.hbm_to_vmem [thread:$0]  %s2, 3072, %s40, [#allocation6], 64, 64, 4
    $region13: #{tpu_custom_call.1} parent=1 // pred_fallthru
      _
    // Predicated region
    $region14: #{tpu_custom_call.1} parent=1 // pred_check
      _
    $region15: #{tpu_custom_call.1} parent=1 // pred_check_branch
      %47 = sbr.rel (0) target = $region17
    $region16: #{tpu_custom_call.1} parent=1 // pred_region
      _
    $region17: #{tpu_custom_call.1} parent=1 // pred_fallthru
      _
    // Predicated region
    $region18: #{tpu_custom_call.1} parent=1 // pred_check
      _
    $region19: #{tpu_custom_call.1} parent=1 // pred_check_branch
      %49 = sbr.rel (0) target = $region21
    $region20: #{tpu_custom_call.1} parent=1 // pred_region
      %50 = dma.done [#allocation3], 128
    $region21: #{tpu_custom_call.1} parent=1 // pred_fallthru
      _
    // Predicated region
    $region22: #{tpu_custom_call.1} parent=1 // pred_check
      _
    $region23: #{tpu_custom_call.1} parent=1 // pred_check_branch
      %52 = sbr.rel (0) target = $region25
    $region24: #{tpu_custom_call.1} parent=1 // pred_region
      %53 = dma.done [#allocation6], 64
    $region25: #{tpu_custom_call.1} parent=1 // pred_fallthru
      _
    // Predicated region
    $region26: #{tpu_custom_call.1} parent=1 // pred_check
      _
    $region27: #{tpu_custom_call.1} parent=1 // pred_check_branch
      %55 = sbr.rel (0) target = $region29
    $region28: #{tpu_custom_call.1} parent=1 // pred_region
      %56 = dma.done [#allocation6], 3072
    $region29: #{tpu_custom_call.1} parent=1 // pred_fallthru
      _
    %v58 = vld [vmem:[#allocation2] sm:$0xff]
    %v59 = vpack.c.bf16 %v58, %v58
    %v60 = vld [vmem:[%s3] sm:$0x1]
    %v61 = vld [vmem:[%s3 + $0x1] sm:$0x1]
    %v62 = vld [vmem:[%s3 + $0x2] sm:$0x1]
    %v63 = vld [vmem:[%s3 + $0x3] sm:$0x1]
    %v64 = vld [vmem:[#allocation5] sm:$0xf]
    %v65 = vlaneseq
    %v66 = vshrl.u32 %v65, 7
    %v67 = vsub.s32 0, %v66
    %v68 = vrot.slane %v60, %v67
    %vm69 = vcmask 64512
    %v71 = vsel %vm69, %v59, 0
    %vm73 = vcmask 1043456
    %v75 = vsel %vm73, %v64, 0
    %77 = vmatprep.subr.bf16.mxu0 0
    %78 = vmatpush1.bf16.msra.mxu0 %v75
    %79 = vmatprep.subr.bf16.mxu0 0
    %80 = vmatpush1.bf16.msra.mxu0 0
    %81 = vmatprep.subr.bf16.mxu0 0
    %82 = vmatpush1.bf16.msra.mxu0 0
    %83 = vmatprep.subr.bf16.mxu0 0
    %84 = vmatpush1.bf16.msra.mxu0 0
    %85 = vmatprep.subr.bf16.mxu0 0
    %86 = vmatpush1.bf16.msra.mxu0 0
    %87 = vmatprep.subr.bf16.mxu0 0
    %88 = vmatpush1.bf16.msra.mxu0 0
    %89 = vmatprep.subr.bf16.mxu0 0
    %90 = vmatpush1.bf16.msra.mxu0 0
    %91 = vmatprep.subr.bf16.mxu0 0
    %92 = vmatpush1.bf16.msra.mxu0 0
    %93 = vmatprep.subr.bf16.mxu0 0
    %94 = vmatpush1.bf16.msra.mxu0 0
    %95 = vmatprep.subr.bf16.mxu0 0
    %96 = vmatpush1.bf16.msra.mxu0 0
    %97 = vmatprep.subr.bf16.mxu0 0
    %98 = vmatpush1.bf16.msra.mxu0 0
    %99 = vmatprep.subr.bf16.mxu0 0
    %100 = vmatpush1.bf16.msra.mxu0 0
    %101 = vmatprep.subr.bf16.mxu0 0
    %102 = vmatpush1.bf16.msra.mxu0 0
    %103 = vmatprep.subr.bf16.mxu0 0
    %104 = vmatpush1.bf16.msra.mxu0 0
    %105 = vmatprep.subr.bf16.mxu0 0
    %106 = vmatpush1.bf16.msra.mxu0 0
    %107 = vmatprep.subr.bf16.mxu0 0
    %108 = vmatpush1.bf16.msra.mxu0 0
    %109 = vmatprep.mubr.bf16.mxu0 0
    %110 = vmatmul.mubr.bf16.gmra.mrb[0].mxu0 %v71
    %v111 = vpop.f32.mrb[0].mxu0
    %v112 = vadd.f32 %v68, %v111
    %v113 = vpop.f32.mrb[0].mxu0
    %v114 = vpop.f32.mrb[0].mxu0
    %v115 = vpop.f32.mrb[0].mxu0
    %116 = vdwg.mxu0
    %v117 = vmax.f32 %v112, 0.0
    %v118 = vpack.c.bf16 %v117, %v117
    %v119 = vld [vmem:[#allocation7] sm:$0xf]
    %v120 = vld [vmem:[#allocation7 + $0x4] sm:$0xf]
    %v121 = vld [vmem:[#allocation7 + $0x8] sm:$0xf]
    %v122 = vld [vmem:[#allocation7 + $0xc] sm:$0xf]
    %v123 = vld [vmem:[#allocation7 + $0x10] sm:$0xf]
    %v124 = vld [vmem:[#allocation7 + $0x14] sm:$0xf]
    %v125 = vld [vmem:[#allocation7 + $0x18] sm:$0xf]
    %v126 = vld [vmem:[#allocation7 + $0x1c] sm:$0xf]
    %v127 = vld [vmem:[#allocation7 + $0x20] sm:$0xf]
    %v128 = vld [vmem:[#allocation7 + $0x24] sm:$0xf]
    %v129 = vld [vmem:[#allocation7 + $0x28] sm:$0xf]
    %v130 = vld [vmem:[#allocation7 + $0x2c] sm:$0xf]
    %v131 = vld [vmem:[#allocation7 + $0x30] sm:$0xf]
    %v132 = vld [vmem:[#allocation7 + $0x34] sm:$0xf]
    %v133 = vld [vmem:[#allocation7 + $0x38] sm:$0xf]
    %v134 = vld [vmem:[#allocation7 + $0x3c] sm:$0xf]
    %v135 = vlaneseq
    %v136 = vshrl.u32 %v135, 7
    %v137 = vsub.s32 0, %v136
    %v138 = vrot.slane %v61, %v137
    %v155 = vunpack.c.l.b16 %v119
    %v156 = vunpack.c.l.b16 %v120
    %v157 = vunpack.c.l.b16 %v121
    %v158 = vunpack.c.l.b16 %v122
    %v159 = vunpack.c.l.b16 %v123
    %v160 = vunpack.c.l.b16 %v124
    %v161 = vunpack.c.l.b16 %v125
    %v162 = vunpack.c.l.b16 %v126
    %v163 = vunpack.c.l.b16 %v127
    %v164 = vunpack.c.l.b16 %v128
    %v165 = vunpack.c.l.b16 %v129
    %v166 = vunpack.c.l.b16 %v130
    %v167 = vunpack.c.l.b16 %v131
    %v168 = vunpack.c.l.b16 %v132
    %v169 = vunpack.c.l.b16 %v133
    %v170 = vunpack.c.l.b16 %v134
    %v171 = vpack.c.b16 %v156, %v155
    %v172 = vpack.c.b16 %v158, %v157
    %v173 = vpack.c.b16 %v160, %v159
    %v174 = vpack.c.b16 %v162, %v161
    %v175 = vpack.c.b16 %v164, %v163
    %v176 = vpack.c.b16 %v166, %v165
    %v177 = vpack.c.b16 %v168, %v167
    %v178 = vpack.c.b16 %v170, %v169
    %187 = vmatprep.subr.bf16.mxu0 0
    %188 = vmatpush1.bf16.msra.mxu0 %v171
    %189 = vmatprep.subr.bf16.mxu0 0
    %190 = vmatpush1.bf16.msra.mxu0 %v172
    %191 = vmatprep.subr.bf16.mxu0 0
    %192 = vmatpush1.bf16.msra.mxu0 %v173
    %193 = vmatprep.subr.bf16.mxu0 0
    %194 = vmatpush1.bf16.msra.mxu0 %v174
    %195 = vmatprep.subr.bf16.mxu0 0
    %196 = vmatpush1.bf16.msra.mxu0 %v175
    %197 = vmatprep.subr.bf16.mxu0 0
    %198 = vmatpush1.bf16.msra.mxu0 %v176
    %199 = vmatprep.subr.bf16.mxu0 0
    %200 = vmatpush1.bf16.msra.mxu0 %v177
    %201 = vmatprep.subr.bf16.mxu0 0
    %202 = vmatpush1.bf16.msra.mxu0 %v178
    %203 = vmatprep.subr.bf16.mxu0 0
    %204 = vmatpush1.bf16.msra.mxu0 0
    %205 = vmatprep.subr.bf16.mxu0 0
    %206 = vmatpush1.bf16.msra.mxu0 0
    %207 = vmatprep.subr.bf16.mxu0 0
    %208 = vmatpush1.bf16.msra.mxu0 0
    %209 = vmatprep.subr.bf16.mxu0 0
    %210 = vmatpush1.bf16.msra.mxu0 0
    %211 = vmatprep.subr.bf16.mxu0 0
    %212 = vmatpush1.bf16.msra.mxu0 0
    %213 = vmatprep.subr.bf16.mxu0 0
    %214 = vmatpush1.bf16.msra.mxu0 0
    %215 = vmatprep.subr.bf16.mxu0 0
    %216 = vmatpush1.bf16.msra.mxu0 0
    %217 = vmatprep.subr.bf16.mxu0 0
    %218 = vmatpush1.bf16.msra.mxu0 0
    %219 = vmatprep.mubr.bf16.mxu0 0
    %220 = vmatmul.mubr.bf16.gmra.mrb[0].mxu0 %v118
    %v221 = vpop.f32.mrb[0].mxu0
    %v222 = vadd.f32 %v138, %v221
    %v223 = vpop.f32.mrb[0].mxu0
    %v224 = vpop.f32.mrb[0].mxu0
    %v225 = vpop.f32.mrb[0].mxu0
    %226 = vdwg.mxu0
    %v227 = vmax.f32 %v222, 0.0
    %v228 = vpack.c.bf16 %v227, %v227
    %v229 = vld [vmem:[#allocation7 + $0x40] sm:$0xf]
    %v230 = vld [vmem:[#allocation7 + $0x44] sm:$0xf]
    %v231 = vld [vmem:[#allocation7 + $0x48] sm:$0xf]
    %v232 = vld [vmem:[#allocation7 + $0x4c] sm:$0xf]
    %v233 = vld [vmem:[#allocation7 + $0x50] sm:$0xf]
    %v234 = vld [vmem:[#allocation7 + $0x54] sm:$0xf]
    %v235 = vld [vmem:[#allocation7 + $0x58] sm:$0xf]
    %v236 = vld [vmem:[#allocation7 + $0x5c] sm:$0xf]
    %v237 = vld [vmem:[#allocation7 + $0x60] sm:$0xf]
    %v238 = vld [vmem:[#allocation7 + $0x64] sm:$0xf]
    %v239 = vld [vmem:[#allocation7 + $0x68] sm:$0xf]
    %v240 = vld [vmem:[#allocation7 + $0x6c] sm:$0xf]
    %v241 = vld [vmem:[#allocation7 + $0x70] sm:$0xf]
    %v242 = vld [vmem:[#allocation7 + $0x74] sm:$0xf]
    %v243 = vld [vmem:[#allocation7 + $0x78] sm:$0xf]
    %v244 = vld [vmem:[#allocation7 + $0x7c] sm:$0xf]
    %v245 = vlaneseq
    %v246 = vshrl.u32 %v245, 7
    %v247 = vsub.s32 0, %v246
    %v248 = vrot.slane %v62, %v247
    %v265 = vunpack.c.l.b16 %v229
    %v266 = vunpack.c.l.b16 %v230
    %v267 = vunpack.c.l.b16 %v231
    %v268 = vunpack.c.l.b16 %v232
    %v269 = vunpack.c.l.b16 %v233
    %v270 = vunpack.c.l.b16 %v234
    %v271 = vunpack.c.l.b16 %v235
    %v272 = vunpack.c.l.b16 %v236
    %v273 = vunpack.c.l.b16 %v237
    %v274 = vunpack.c.l.b16 %v238
    %v275 = vunpack.c.l.b16 %v239
    %v276 = vunpack.c.l.b16 %v240
    %v277 = vunpack.c.l.b16 %v241
    %v278 = vunpack.c.l.b16 %v242
    %v279 = vunpack.c.l.b16 %v243
    %v280 = vunpack.c.l.b16 %v244
    %v281 = vpack.c.b16 %v266, %v265
    %v282 = vpack.c.b16 %v268, %v267
    %v283 = vpack.c.b16 %v270, %v269
    %v284 = vpack.c.b16 %v272, %v271
    %v285 = vpack.c.b16 %v274, %v273
    %v286 = vpack.c.b16 %v276, %v275
    %v287 = vpack.c.b16 %v278, %v277
    %v288 = vpack.c.b16 %v280, %v279
    %297 = vmatprep.subr.bf16.mxu0 0
    %298 = vmatpush1.bf16.msra.mxu0 %v281
    %299 = vmatprep.subr.bf16.mxu0 0
    %300 = vmatpush1.bf16.msra.mxu0 %v282
    %301 = vmatprep.subr.bf16.mxu0 0
    %302 = vmatpush1.bf16.msra.mxu0 %v283
    %303 = vmatprep.subr.bf16.mxu0 0
    %304 = vmatpush1.bf16.msra.mxu0 %v284
    %305 = vmatprep.subr.bf16.mxu0 0
    %306 = vmatpush1.bf16.msra.mxu0 %v285
    %307 = vmatprep.subr.bf16.mxu0 0
    %308 = vmatpush1.bf16.msra.mxu0 %v286
    %309 = vmatprep.subr.bf16.mxu0 0
    %310 = vmatpush1.bf16.msra.mxu0 %v287
    %311 = vmatprep.subr.bf16.mxu0 0
    %312 = vmatpush1.bf16.msra.mxu0 %v288
    %313 = vmatprep.subr.bf16.mxu0 0
    %314 = vmatpush1.bf16.msra.mxu0 0
    %315 = vmatprep.subr.bf16.mxu0 0
    %316 = vmatpush1.bf16.msra.mxu0 0
    %317 = vmatprep.subr.bf16.mxu0 0
    %318 = vmatpush1.bf16.msra.mxu0 0
    %319 = vmatprep.subr.bf16.mxu0 0
    %320 = vmatpush1.bf16.msra.mxu0 0
    %321 = vmatprep.subr.bf16.mxu0 0
    %322 = vmatpush1.bf16.msra.mxu0 0
    %323 = vmatprep.subr.bf16.mxu0 0
    %324 = vmatpush1.bf16.msra.mxu0 0
    %325 = vmatprep.subr.bf16.mxu0 0
    %326 = vmatpush1.bf16.msra.mxu0 0
    %327 = vmatprep.subr.bf16.mxu0 0
    %328 = vmatpush1.bf16.msra.mxu0 0
    %329 = vmatprep.mubr.bf16.mxu0 0
    %330 = vmatmul.mubr.bf16.gmra.mrb[0].mxu0 %v228
    %v331 = vpop.f32.mrb[0].mxu0
    %v332 = vadd.f32 %v248, %v331
    %v333 = vpop.f32.mrb[0].mxu0
    %v334 = vpop.f32.mrb[0].mxu0
    %v335 = vpop.f32.mrb[0].mxu0
    %336 = vdwg.mxu0
    %v337 = vmax.f32 %v332, 0.0
    %v338 = vpack.c.bf16 %v337, %v337
    %v339 = vld [vmem:[#allocation7 + $0x80] sm:$0xf]
    %v340 = vld [vmem:[#allocation7 + $0x84] sm:$0xf]
    %v341 = vld [vmem:[#allocation7 + $0x88] sm:$0xf]
    %v342 = vld [vmem:[#allocation7 + $0x8c] sm:$0xf]
    %v343 = vld [vmem:[#allocation7 + $0x90] sm:$0xf]
    %v344 = vld [vmem:[#allocation7 + $0x94] sm:$0xf]
    %v345 = vld [vmem:[#allocation7 + $0x98] sm:$0xf]
    %v346 = vld [vmem:[#allocation7 + $0x9c] sm:$0xf]
    %v347 = vld [vmem:[#allocation7 + $0xa0] sm:$0xf]
    %v348 = vld [vmem:[#allocation7 + $0xa4] sm:$0xf]
    %v349 = vld [vmem:[#allocation7 + $0xa8] sm:$0xf]
    %v350 = vld [vmem:[#allocation7 + $0xac] sm:$0xf]
    %v351 = vld [vmem:[#allocation7 + $0xb0] sm:$0xf]
    %v352 = vld [vmem:[#allocation7 + $0xb4] sm:$0xf]
    %v353 = vld [vmem:[#allocation7 + $0xb8] sm:$0xf]
    %v354 = vld [vmem:[#allocation7 + $0xbc] sm:$0xf]
    %v355 = vlaneseq
    %v356 = vshrl.u32 %v355, 7
    %v357 = vsub.s32 0, %v356
    %v358 = vrot.slane %v63, %v357
    %v375 = vunpack.c.l.b16 %v339
    %v376 = vunpack.c.l.b16 %v340
    %v377 = vunpack.c.l.b16 %v341
    %v378 = vunpack.c.l.b16 %v342
    %v379 = vunpack.c.l.b16 %v343
    %v380 = vunpack.c.l.b16 %v344
    %v381 = vunpack.c.l.b16 %v345
    %v382 = vunpack.c.l.b16 %v346
    %v383 = vunpack.c.l.b16 %v347
    %v384 = vunpack.c.l.b16 %v348
    %v385 = vunpack.c.l.b16 %v349
    %v386 = vunpack.c.l.b16 %v350
    %v387 = vunpack.c.l.b16 %v351
    %v388 = vunpack.c.l.b16 %v352
    %v389 = vunpack.c.l.b16 %v353
    %v390 = vunpack.c.l.b16 %v354
    %v391 = vpack.c.b16 %v376, %v375
    %v392 = vpack.c.b16 %v378, %v377
    %v393 = vpack.c.b16 %v380, %v379
    %v394 = vpack.c.b16 %v382, %v381
    %v395 = vpack.c.b16 %v384, %v383
    %v396 = vpack.c.b16 %v386, %v385
    %v397 = vpack.c.b16 %v388, %v387
    %v398 = vpack.c.b16 %v390, %v389
    %407 = vmatprep.subr.bf16.mxu0 0
    %408 = vmatpush1.bf16.msra.mxu0 %v391
    %409 = vmatprep.subr.bf16.mxu0 0
    %410 = vmatpush1.bf16.msra.mxu0 %v392
    %411 = vmatprep.subr.bf16.mxu0 0
    %412 = vmatpush1.bf16.msra.mxu0 %v393
    %413 = vmatprep.subr.bf16.mxu0 0
    %414 = vmatpush1.bf16.msra.mxu0 %v394
    %415 = vmatprep.subr.bf16.mxu0 0
    %416 = vmatpush1.bf16.msra.mxu0 %v395
    %417 = vmatprep.subr.bf16.mxu0 0
    %418 = vmatpush1.bf16.msra.mxu0 %v396
    %419 = vmatprep.subr.bf16.mxu0 0
    %420 = vmatpush1.bf16.msra.mxu0 %v397
    %421 = vmatprep.subr.bf16.mxu0 0
    %422 = vmatpush1.bf16.msra.mxu0 %v398
    %423 = vmatprep.subr.bf16.mxu0 0
    %424 = vmatpush1.bf16.msra.mxu0 0
    %425 = vmatprep.subr.bf16.mxu0 0
    %426 = vmatpush1.bf16.msra.mxu0 0
    %427 = vmatprep.subr.bf16.mxu0 0
    %428 = vmatpush1.bf16.msra.mxu0 0
    %429 = vmatprep.subr.bf16.mxu0 0
    %430 = vmatpush1.bf16.msra.mxu0 0
    %431 = vmatprep.subr.bf16.mxu0 0
    %432 = vmatpush1.bf16.msra.mxu0 0
    %433 = vmatprep.subr.bf16.mxu0 0
    %434 = vmatpush1.bf16.msra.mxu0 0
    %435 = vmatprep.subr.bf16.mxu0 0
    %436 = vmatpush1.bf16.msra.mxu0 0
    %437 = vmatprep.subr.bf16.mxu0 0
    %438 = vmatpush1.bf16.msra.mxu0 0
    %439 = vmatprep.mubr.bf16.mxu0 0
    %440 = vmatmul.mubr.bf16.gmra.mrb[0].mxu0 %v338
    %v441 = vpop.f32.mrb[0].mxu0
    %v442 = vadd.f32 %v358, %v441
    %v443 = vpop.f32.mrb[0].mxu0
    %v444 = vpop.f32.mrb[0].mxu0
    %v445 = vpop.f32.mrb[0].mxu0
    %446 = vdwg.mxu0
    %vm447 = vcmask 31744
    %448 = vst.msk [vmem:[#allocation8] sm:$0xff] %vm447, %v442
    // Predicated region
    $region30: #{tpu_custom_call.1} parent=1 // pred_check
      _
    $region31: #{tpu_custom_call.1} parent=1 // pred_check_branch
      %450 = sbr.rel (0) target = $region33
    $region32: #{tpu_custom_call.1} parent=1 // pred_region
      %s452 = ssub.s32 128, 32
      %453 = vsyncadd [#allocation4], %s452
      %s454 = sshll.u32 [#allocation8], 4
      %s455 = int_to_ptr.vmem [resolvable:$true] %s454
      %460 = dma.vmem_to_hbm [thread:$0]  %s455, 32, %s4, [#allocation4], 32, 32, 2
    $region33: #{tpu_custom_call.1} parent=1 // pred_fallthru
      _
    // Predicated region
    $region34: #{tpu_custom_call.1} parent=1 // pred_check
      _
    $region35: #{tpu_custom_call.1} parent=1 // pred_check_branch
      %462 = sbr.rel (0) target = $region37
    $region36: #{tpu_custom_call.1} parent=1 // pred_region
      %463 = dma.done [#allocation4], 128
    $region37: #{tpu_custom_call.1} parent=1 // pred_fallthru
      _
    %464 = vsyncpa [#allocation3], 1
    %465 = vsyncpa [#allocation6], 1
    %466 = vsyncpa [#allocation4], 1

</llo_original>
